<compile_context>
chip_gen: v7x
topology: tpu7x:2x2x1
jax: 0.10.0
libtpu: 0.0.40
codegen_flags: <defaults>
</compile_context>

<pallas_src>
import functools

import jax
import jax.numpy as jnp
from jax.experimental import pallas as pl
from jax.experimental.pallas import tpu as pltpu


# --------------------------------------------------------------------------- #
# Helpers
# --------------------------------------------------------------------------- #
def _round_up(x, m):
    return ((x + m - 1) // m) * m


def _cdiv(a, b):
    return (a + b - 1) // b


def _vmem_limit_bytes():
    """Per-generation scoped-VMEM limit: v7x (64 MiB phys) -> 48 MiB, v5e/v6e -> 96 MiB."""
    cap = 64 * 1024 * 1024  # conservative fallback (v7x physical VMEM)
    try:
        info = pltpu.get_tpu_info()
        cap = int(getattr(info, "vmem_capacity_bytes", cap))
    except Exception:
        pass
    if cap <= 0:
        cap = 64 * 1024 * 1024
    return int(min(cap * 3 // 4, 96 * 1024 * 1024))


def _pick_row_tile(rows, per_row_vmem_bytes, budget_bytes, cap=None):
    """Largest row tile whose per-step working set fits the budget."""
    max_rows = max(16, budget_bytes // max(per_row_vmem_bytes, 1))
    if cap is not None:
        max_rows = max(16, min(max_rows, cap))
    if rows <= max_rows:
        return rows  # single full-extent tile (always layout-legal)
    return max(16, (max_rows // 16) * 16)  # sublane aligned (f32 and bf16)


def _split_grid(rows, tile_r, max_splits=2):
    num_tiles = _cdiv(rows, tile_r)
    num_splits = max_splits if num_tiles >= max_splits else 1
    tiles_per_split = _cdiv(num_tiles, num_splits)
    return num_splits, tiles_per_split, num_tiles


# --------------------------------------------------------------------------- #
# Kernels
# --------------------------------------------------------------------------- #
def _ce_sum_kernel(logits_ref, labels_ref, out_ref, *, rows, weight, tile_r,
                   tiles_per_split):
    """Accumulate weight * CE(row) into the resident per-split output block.

    logits_ref : (tile_r, C) native dtype (rows on sublanes, classes on lanes)
    labels_ref : (tile_r, 1) int32
    out_ref    : (tile_r, 1) f32, resident across the inner grid axis
    """
    p = pl.program_id(0)
    i = pl.program_id(1)

    @pl.when(i == 0)
    def _init():
        out_ref[...] = jnp.zeros_like(out_ref)

    x = logits_ref[...].astype(jnp.float32)                               # (T, C)
    m = jnp.max(x, axis=-1, keepdims=True)                                # lane reduce
    shifted = x - m
    lse = jnp.log(jnp.sum(jnp.exp(shifted), axis=-1, keepdims=True))      # (T, 1)
    cls = jax.lax.broadcasted_iota(jnp.int32, x.shape, 1)                 # class idx on lanes
    picked = jnp.sum(jnp.where(cls == labels_ref[...], shifted, 0.0),
                     axis=-1, keepdims=True)                              # (T, 1)
    nll = lse - picked                                                    # LSE - logit[label]

    row0 = (p * tiles_per_split + i) * tile_r
    ridx = row0 + jax.lax.broadcasted_iota(jnp.int32, (tile_r, 1), 0)
    out_ref[...] += jnp.where(ridx < rows, weight * nll, 0.0)             # mask ragged rows


def _contrastive_sum_kernel(pos_ref, neg_ref, out_ref, *, bsz, num_neg, inv_temp,
                            scale, tile_b, tiles_per_split):
    """Accumulate scale * sum_d(-log_softmax([pos;neg]/T, axis=0)[0]) per sample.

    pos_ref : (tile_b, D) native dtype
    neg_ref : (tile_b, N, D) native dtype
    out_ref : (tile_b, 1) f32, resident across the inner grid axis
    """
    p = pl.program_id(0)
    i = pl.program_id(1)

    @pl.when(i == 0)
    def _init():
        out_ref[...] = jnp.zeros_like(out_ref)

    pos = pos_ref[...].astype(jnp.float32) * inv_temp                     # (T, D)
    if num_neg <= 64:
        # Unrolled over the (small) candidate axis: only (T, D)-sized temporaries.
        m = pos
        negs = []
        for n in range(num_neg):
            v = neg_ref[:, n, :].astype(jnp.float32) * inv_temp           # (T, D)
            negs.append(v)
            m = jnp.maximum(m, v)
        se = jnp.exp(pos - m)
        for v in negs:
            se = se + jnp.exp(v - m)
    else:
        neg = neg_ref[...].astype(jnp.float32) * inv_temp                 # (T, N, D)
        m = jnp.maximum(jnp.max(neg, axis=1), pos)                        # (T, D)
        se = jnp.exp(pos - m) + jnp.sum(jnp.exp(neg - m[:, None, :]), axis=1)

    nll = m + jnp.log(se) - pos                                           # (T, D)
    per_row = jnp.sum(nll, axis=-1, keepdims=True)                        # (T, 1)

    row0 = (p * tiles_per_split + i) * tile_b
    ridx = row0 + jax.lax.broadcasted_iota(jnp.int32, (tile_b, 1), 0)
    out_ref[...] += jnp.where(ridx < bsz, scale * per_row, 0.0)


# --------------------------------------------------------------------------- #
# pallas_call wrappers
# --------------------------------------------------------------------------- #
def _weighted_ce_sum(logits, labels, weight, *, vmem_limit, tile_rows_cap=None):
    rows, c = logits.shape
    itemsize = logits.dtype.itemsize
    c_pad = _round_up(c, 128)
    # Per-row VMEM: 2x double-buffered logits block + 2x lane-padded labels block
    # + ~4 f32 (T, C) temporaries + output rows.
    per_row = 2 * c_pad * itemsize + 2 * 512 + 4 * c_pad * 4 + 2 * 512
    budget = int(vmem_limit * 0.55)
    tile_r = _pick_row_tile(rows, per_row, budget, cap=tile_rows_cap)
    num_splits, tiles_per_split, num_tiles = _split_grid(rows, tile_r)

    labels2 = labels.reshape(rows, 1).astype(jnp.int32)

    kernel = functools.partial(_ce_sum_kernel, rows=rows, weight=float(weight),
                               tile_r=tile_r, tiles_per_split=tiles_per_split)

    def row_map(p, i):
        blk = p * tiles_per_split + i
        return (jnp.minimum(blk, num_tiles - 1), 0)   # clamp overflow tiles (masked)

    cost = pl.CostEstimate(
        flops=int(7 * rows * c),
        transcendentals=int(rows * (c + 1)),
        bytes_accessed=int(rows * c * itemsize + rows * 4 + num_splits * tile_r * 4),
    )
    out = pl.pallas_call(
        kernel,
        out_shape=jax.ShapeDtypeStruct((num_splits * tile_r, 1), jnp.float32),
        grid=(num_splits, tiles_per_split),
        in_specs=[
            pl.BlockSpec((tile_r, c), row_map),
            pl.BlockSpec((tile_r, 1), row_map),
        ],
        out_specs=pl.BlockSpec((tile_r, 1), lambda p, i: (p, 0)),
        compiler_params=pltpu.CompilerParams(
            dimension_semantics=("parallel", "arbitrary"),
            vmem_limit_bytes=vmem_limit),
        cost_estimate=cost,
    )(logits, labels2)
    return jnp.sum(out)


def _contrastive_mean(pos_sims, neg_sims, temperature, *, vmem_limit,
                      tile_rows_cap=None):
    bsz, d = pos_sims.shape
    num_neg = neg_sims.shape[1]
    itemsize = neg_sims.dtype.itemsize
    d_pad = _round_up(d, 128)
    n_pad = _round_up(num_neg, 8)
    # Per-sample VMEM: double-buffered neg + pos blocks, ~2 neg-sized f32 temps,
    # ~4 pos-sized f32 temps, output rows.
    per_row = (2 * n_pad * d_pad * itemsize + 2 * d_pad * pos_sims.dtype.itemsize
               + 2 * n_pad * d_pad * 4 + 4 * d_pad * 4 + 2 * 512)
    budget = int(vmem_limit * 0.55)
    tile_b = _pick_row_tile(bsz, per_row, budget, cap=tile_rows_cap)
    num_splits, tiles_per_split, num_tiles = _split_grid(bsz, tile_b)

    kernel = functools.partial(
        _contrastive_sum_kernel, bsz=bsz, num_neg=num_neg,
        inv_temp=1.0 / float(temperature), scale=1.0 / float(bsz * d),
        tile_b=tile_b, tiles_per_split=tiles_per_split)

    def row_map2(p, i):
        blk = p * tiles_per_split + i
        return (jnp.minimum(blk, num_tiles - 1), 0)

    def row_map3(p, i):
        blk = p * tiles_per_split + i
        return (jnp.minimum(blk, num_tiles - 1), 0, 0)

    cost = pl.CostEstimate(
        flops=int(6 * bsz * (num_neg + 1) * d),
        transcendentals=int(bsz * d * (num_neg + 2)),
        bytes_accessed=int(neg_sims.size * itemsize
                           + pos_sims.size * pos_sims.dtype.itemsize
                           + num_splits * tile_b * 4),
    )
    out = pl.pallas_call(
        kernel,
        out_shape=jax.ShapeDtypeStruct((num_splits * tile_b, 1), jnp.float32),
        grid=(num_splits, tiles_per_split),
        in_specs=[
            pl.BlockSpec((tile_b, d), row_map2),
            pl.BlockSpec((tile_b, num_neg, d), row_map3),
        ],
        out_specs=pl.BlockSpec((tile_b, 1), lambda p, i: (p, 0)),
        compiler_params=pltpu.CompilerParams(
            dimension_semantics=("parallel", "arbitrary"),
            vmem_limit_bytes=vmem_limit),
        cost_estimate=cost,
    )(pos_sims, neg_sims)
    return jnp.sum(out)


def combine_loss(softmax_positive, label_positive, softmax_negative, label_negative,
                 positive_similarities, negative_similarities, temperature=1.0,
                 *, tile_rows_cap=None):
    b, c = softmax_positive.shape
    k = softmax_negative.shape[1]
    bk = b * k
    vmem_limit = _vmem_limit_bytes()

    neg_logits = softmax_negative.reshape(bk, c)          # free reshape (contiguous)
    neg_labels = label_negative.reshape(bk)

    ce_pos = _weighted_ce_sum(softmax_positive, label_positive.reshape(b),
                              0.5 / b, vmem_limit=vmem_limit,
                              tile_rows_cap=tile_rows_cap)
    ce_neg = _weighted_ce_sum(neg_logits, neg_labels, 0.5 / bk,
                              vmem_limit=vmem_limit, tile_rows_cap=tile_rows_cap)
    con = _contrastive_mean(positive_similarities, negative_similarities,
                            temperature, vmem_limit=vmem_limit,
                            tile_rows_cap=tile_rows_cap)
    return ce_pos + ce_neg + con


# --------------------------------------------------------------------------- #
# Reference and test
# --------------------------------------------------------------------------- #
def _reference(softmax_positive, label_positive, softmax_negative, label_negative,
               positive_similarities, negative_similarities, temperature=1.0):
    def ce(logits, labels):
        logp = jax.nn.log_softmax(logits, axis=-1)
        return -jnp.mean(jnp.take_along_axis(logp, labels[:, None], axis=-1))

    pos_loss = ce(softmax_positive, label_positive)
    neg_loss = ce(softmax_negative.reshape(-1, softmax_negative.shape[-1]),
                  label_negative.reshape(-1))
    mean_loss = (pos_loss + neg_loss) / 2.0
    cat = jnp.concatenate(
        [positive_similarities[:, None, :], negative_similarities], axis=1)  # (B,1+N,D)
    ls = jax.nn.log_softmax(cat / temperature, axis=1)
    contrast = -jnp.mean(ls[:, 0, :])
    return mean_loss + contrast


if __name__ == "__main__":
    key = jax.random.PRNGKey(0)

    def make_inputs(key, B, C, K, N, D):
        ks = jax.random.split(key, 6)
        return (jax.random.normal(ks[0], (B, C), jnp.float32),
                jax.random.randint(ks[1], (B,), 0, C, jnp.int32),
                jax.random.normal(ks[2], (B, K, C), jnp.float32),
                jax.random.randint(ks[3], (B, K), 0, C, jnp.int32),
                jax.random.normal(ks[4], (B, D), jnp.float32),
                jax.random.normal(ks[5], (B, N, D), jnp.float32))

    kA, kB = jax.random.split(key)

    # Test 1: tiny shapes -> single full-extent tile per call.
    args1 = make_inputs(kA, B=4, C=8, K=3, N=4, D=16)
    out1 = jax.block_until_ready(combine_loss(*args1, temperature=1.0))
    ref1 = _reference(*args1, temperature=1.0)
    assert jnp.allclose(out1, ref1, atol=1e-4, rtol=1e-4), (out1, ref1)

    # Test 2: forced small row tiles -> multi-tile, 2-way split, ragged masking.
    args2 = make_inputs(kB, B=40, C=8, K=3, N=4, D=16)
    out2 = jax.block_until_ready(
        combine_loss(*args2, temperature=0.5, tile_rows_cap=16))
    ref2 = _reference(*args2, temperature=0.5)
    assert jnp.allclose(out2, ref2, atol=1e-4, rtol=1e-4), (out2, ref2)

    print("KERNEL_OK")
</pallas_src>

<mosaic_0001>
module attributes {stable_mosaic.version = 11 : i64} {
  func.func @_ce_sum_kernel(%arg0: i32, %arg1: i32, %arg2: memref<4x8xf32, #tpu.memory_space<vmem>>, %arg3: memref<4x1xi32, #tpu.memory_space<vmem>>, %arg4: memref<4x1xf32, #tpu.memory_space<vmem>>) attributes {dimension_semantics = [#tpu.dimension_semantics<parallel>, #tpu.dimension_semantics<arbitrary>], iteration_bounds = array<i64: 1, 1>, scalar_prefetch = 0 : i64, scratch_operands = 0 : i64, tpu.core_type = #tpu.core_type<tc>, window_params = [{transform_indices = @transform_0, window_bounds = array<i64: 4, 8>}, {transform_indices = @transform_1, window_bounds = array<i64: 4, 1>}, {transform_indices = @transform_2, window_bounds = array<i64: 4, 1>}]} {
    %c0_i32 = arith.constant 0 : i32
    %0 = arith.cmpi eq, %arg1, %c0_i32 : i32
    %1 = arith.extui %0 : i1 to i32
    %c0_i32_0 = arith.constant 0 : i32
    %2 = arith.cmpi ne, %1, %c0_i32_0 : i32
    scf.if %2 {
      %cst_14 = arith.constant 0.000000e+00 : f32
      %36 = vector.broadcast %cst_14 : f32 to vector<4x1xf32>
      %c0_15 = arith.constant 0 : index
      %c0_16 = arith.constant 0 : index
      %37 = vector.load %arg4[%c0_15, %c0_16] : memref<4x1xf32, #tpu.memory_space<vmem>>, vector<4x1xf32>
      tpu.vector_store %arg4[%c0_15, %c0_16], %36 {strides = array<i32>} : memref<4x1xf32, #tpu.memory_space<vmem>>, vector<4x1xf32>,
    } else {
    }
    %c0 = arith.constant 0 : index
    %c0_1 = arith.constant 0 : index
    %3 = vector.load %arg2[%c0, %c0_1] : memref<4x8xf32, #tpu.memory_space<vmem>>, vector<4x8xf32>
    %cst = arith.constant dense<0xFF800000> : vector<4xf32>
    %4 = vector.multi_reduction <maximumf>, %3, %cst [1] : vector<4x8xf32> to vector<4xf32>
    %5 = vector.shape_cast %4 : vector<4xf32> to vector<4x1xf32>
    %6 = vector.broadcast %5 : vector<4x1xf32> to vector<4x8xf32>
    %7 = arith.subf %3, %6 : vector<4x8xf32>
    %8 = math.exp %7 : vector<4x8xf32>
    %cst_2 = arith.constant dense<0.000000e+00> : vector<4xf32>
    %9 = vector.multi_reduction <add>, %8, %cst_2 [1] : vector<4x8xf32> to vector<4xf32>
    %10 = vector.shape_cast %9 : vector<4xf32> to vector<4x1xf32>
    %11 = math.log %10 : vector<4x1xf32>
    %12 = tpu.iota {dimensions = array<i32: 1>} : vector<4x8xi32>
    %c0_3 = arith.constant 0 : index
    %c0_4 = arith.constant 0 : index
    %13 = vector.load %arg3[%c0_3, %c0_4] : memref<4x1xi32, #tpu.memory_space<vmem>>, vector<4x1xi32>
    %14 = vector.broadcast %13 : vector<4x1xi32> to vector<4x8xi32>
    %15 = arith.cmpi eq, %12, %14 : vector<4x8xi32>
    %cst_5 = arith.constant 0.000000e+00 : f32
    %16 = vector.broadcast %cst_5 : f32 to vector<4x8xf32>
    %17 = arith.select %15, %7, %16 : vector<4x8xi1>, vector<4x8xf32>
    %cst_6 = arith.constant dense<0.000000e+00> : vector<4xf32>
    %18 = vector.multi_reduction <add>, %17, %cst_6 [1] : vector<4x8xf32> to vector<4xf32>
    %19 = vector.shape_cast %18 : vector<4xf32> to vector<4x1xf32>
    %20 = arith.subf %11, %19 : vector<4x1xf32>
    %c1_i32 = arith.constant 1 : i32
    %21 = arith.muli %arg0, %c1_i32 : i32
    %22 = arith.addi %21, %arg1 : i32
    %c4_i32 = arith.constant 4 : i32
    %23 = arith.muli %22, %c4_i32 : i32
    %24 = tpu.iota {dimensions = array<i32: 0>} : vector<4x1xi32>
    %25 = vector.broadcast %23 : i32 to vector<4x1xi32>
    %26 = arith.addi %25, %24 : vector<4x1xi32>
    %c0_7 = arith.constant 0 : index
    %c0_8 = arith.constant 0 : index
    %27 = vector.load %arg4[%c0_7, %c0_8] : memref<4x1xf32, #tpu.memory_space<vmem>>, vector<4x1xf32>
    %c4_i32_9 = arith.constant 4 : i32
    %28 = vector.broadcast %c4_i32_9 : i32 to vector<4x1xi32>
    %29 = arith.cmpi slt, %26, %28 : vector<4x1xi32>
    %cst_10 = arith.constant 1.250000e-01 : f32
    %30 = vector.broadcast %cst_10 : f32 to vector<4x1xf32>
    %31 = arith.mulf %30, %20 : vector<4x1xf32>
    %cst_11 = arith.constant 0.000000e+00 : f32
    %32 = vector.broadcast %cst_11 : f32 to vector<4x1xf32>
    %33 = arith.select %29, %31, %32 : vector<4x1xi1>, vector<4x1xf32>
    %34 = arith.addf %27, %33 : vector<4x1xf32>
    %c0_12 = arith.constant 0 : index
    %c0_13 = arith.constant 0 : index
    %35 = vector.load %arg4[%c0_12, %c0_13] : memref<4x1xf32, #tpu.memory_space<vmem>>, vector<4x1xf32>
    tpu.vector_store %arg4[%c0_12, %c0_13], %34 {strides = array<i32>} : memref<4x1xf32, #tpu.memory_space<vmem>>, vector<4x1xf32>,
    return
  }
  func.func @transform_0(%arg0: i32, %arg1: i32) -> (i32, i32) {
    %c1_i32 = arith.constant 1 : i32
    %0 = arith.muli %arg0, %c1_i32 : i32
    %1 = arith.addi %0, %arg1 : i32
    %c0_i32 = arith.constant 0 : i32
    %2 = arith.minsi %1, %c0_i32 : i32
    %c0_i32_0 = arith.constant 0 : i32
    %c0_i32_1 = arith.constant 0 : i32
    return %2, %c0_i32_0 : i32, i32
  }
  func.func @transform_1(%arg0: i32, %arg1: i32) -> (i32, i32) {
    %c1_i32 = arith.constant 1 : i32
    %0 = arith.muli %arg0, %c1_i32 : i32
    %1 = arith.addi %0, %arg1 : i32
    %c0_i32 = arith.constant 0 : i32
    %2 = arith.minsi %1, %c0_i32 : i32
    %c0_i32_0 = arith.constant 0 : i32
    %c0_i32_1 = arith.constant 0 : i32
    return %2, %c0_i32_0 : i32, i32
  }
  func.func @transform_2(%arg0: i32, %arg1: i32) -> (i32, i32) {
    %c0_i32 = arith.constant 0 : i32
    %c0_i32_0 = arith.constant 0 : i32
    return %arg0, %c0_i32 : i32, i32
  }
}

</mosaic_0001>

<llo_original>
// kernel: tpu_custom_call.1
$region0: #{tpu_custom_call.1}
  #allocation0 [shape = 'u32[]', space=smem, size = 0x4, offset = 0x4, fixed_abs, tag = 'smem constant byte address 0x4 - core index']
  #allocation1 [shape = 'u32[144,128]{1,0:T(1,128)}', space=vmem, size = 0x12000, scoped, tag = 'internal scratch']
  %s0 = inlined_call_operand.vmem [shape: f32[4,8], index: 0, kind: input, shape index: {}]
  %s1 = inlined_call_operand.vmem [shape: s32[4,1], index: 1, kind: input, shape index: {}]
  %s2 = inlined_call_operand.vmem [shape: f32[4,1], index: 2, kind: output, shape index: {}]
  %s3 = sld [smem:[#allocation0]]
  $region22: #{tpu_custom_call.1} parent=0
    _
  %s5 = ssub.s32 1, %s3
  %s6 = scalar_select 0, %s5, %s3
  // Predicated region
  $region2: #{tpu_custom_call.1} parent=0 // pred_check
    _
  $region3: #{tpu_custom_call.1} parent=0 // pred_check_branch
    %8 = sbr.rel (0) target = $region5
  $region4: #{tpu_custom_call.1} parent=0 // pred_region
    %s9 = sadd.s32 0, 0
    %p10 = scmp.lt.s32.totalorder %s9, 0
    %s11 = scalar_select %p10, %s9, 0
    %p12 = scmp.lt.s32.totalorder %s11, 0
    %s13 = scalar_select %p12, %s11, 0
    %s14 = smul.addr %s13, 4
    %s15 = scalar_lea.vmem %s0, %s14
    %s16 = sadd.s32 0, 0
    %p17 = scmp.lt.s32.totalorder %s16, 0
    %s18 = scalar_select %p17, %s16, 0
  $region5: #{tpu_custom_call.1} parent=0 // pred_fallthru
    _
  // Predicated region
  $region6: #{tpu_custom_call.1} parent=0 // pred_check
    _
  $region7: #{tpu_custom_call.1} parent=0 // pred_check_branch
    %20 = sbr.rel (0) target = $region9
  $region8: #{tpu_custom_call.1} parent=0 // pred_region
    %s21 = sadd.s32 0, 0
    %p22 = scmp.lt.s32.totalorder %s21, 0
    %s23 = scalar_select %p22, %s21, 0
    %p24 = scmp.lt.s32.totalorder %s23, 0
    %s25 = scalar_select %p24, %s23, 0
    %s26 = smul.addr %s25, 4
    %s27 = scalar_lea.vmem %s1, %s26
    %s28 = sadd.s32 0, 0
    %p29 = scmp.lt.s32.totalorder %s28, 0
    %s30 = scalar_select %p29, %s28, 0
  $region9: #{tpu_custom_call.1} parent=0 // pred_fallthru
    _
  %s31 = sadd.s32 0, 0
  %p32 = scmp.lt.s32.totalorder %s31, 0
  %s33 = scalar_select %p32, %s31, 0
  %p34 = scmp.lt.s32.totalorder %s33, 0
  %s35 = scalar_select %p34, %s33, 0
  %s36 = smul.addr %s35, 4
  %s37 = scalar_lea.vmem %s0, %s36
  %s38 = sadd.s32 0, 0
  %p39 = scmp.lt.s32.totalorder %s38, 0
  %s40 = scalar_select %p39, %s38, 0
  %p41 = scmp.lt.s32.totalorder %s40, 0
  %s42 = scalar_select %p41, %s40, 0
  %s43 = smul.addr %s42, 4
  %s44 = scalar_lea.vmem %s1, %s43
  %s45 = sadd.s32 0, 0
  %p46 = scmp.lt.s32.totalorder %s45, 0
  %s47 = scalar_select %p46, %s45, 0
  %p48 = scmp.lt.s32.totalorder %s47, 0
  %s49 = scalar_select %p48, %s47, 0
  %s50 = smul.addr %s49, 4
  %s51 = scalar_lea.vmem %s0, %s50
  %s52 = sadd.s32 0, 0
  %p53 = scmp.lt.s32.totalorder %s52, 0
  %s54 = scalar_select %p53, %s52, 0
  %s55 = sadd.s32 0, 0
  %p56 = scmp.lt.s32.totalorder %s55, 0
  %s57 = scalar_select %p56, %s55, 0
  %p58 = scmp.lt.s32.totalorder %s57, 0
  %s59 = scalar_select %p58, %s57, 0
  %s60 = smul.addr %s59, 4
  %s61 = scalar_lea.vmem %s1, %s60
  %s62 = sadd.s32 0, 0
  %p63 = scmp.lt.s32.totalorder %s62, 0
  %s64 = scalar_select %p63, %s62, 0
  %p65 = scmp.eq.s32.totalorder 0, 0
  // Predicated region
  $region10: #{tpu_custom_call.1} parent=0 // pred_check
    %p66 = pneg %p65
  $region11: #{tpu_custom_call.1} parent=0 // pred_check_branch
    %68 = sbr.rel (%p66) target = $region13
  $region12: #{tpu_custom_call.1} parent=0 // pred_region
    %vm69 = vcmask 3072
    %70 = vst.msk [vmem:[%s2] sm:$0xf] %vm69, 0.0
  $region13: #{tpu_custom_call.1} parent=0 // pred_fallthru
    _
  %v71 = vld [vmem:[%s51] sm:$0xf]
  %vm72 = vcmask 60416
  %v73 = vsel %vm72, %v71, -inf
  %74 = vmax.xlane.f32.xlu0 %v73
  %v75 = vpop.xlane.xlu0 %74
  %v76 = vsub.f32 %v71, %v75
  %v77 = vmul.f32 %v76, 1.442695
  %v78 = vpow.pop %v77
  %v79 = vsel %vm72, %v78, 0.0
  %80 = vadd.xlane.f32.xlu0 %v79
  %v81 = vpop.xlane.xlu0 %80
  %v82 = vlog2.pop %v81
  %v83 = vmul.f32 %v82, 0.6931472
  %v84 = vlaneseq
  %v85 = vand.u32 %v84, 127
  %v86 = vld [vmem:[%s61] sm:$0xf]
  %87 = vset.pattern.permute.xlu0 0
  %88 = vperm.xlu0 %87, %v86
  %v89 = vpop.permute.xlu0 %88
  %vm90 = vcmp.eq.s32.totalorder %v85, %v89
  %v91 = vsel %vm90, %v76, 0.0
  %v92 = vsel %vm72, %v91, 0.0
  %93 = vadd.xlane.f32.xlu0 %v92
  %v94 = vpop.xlane.xlu0 %93
  %v95 = vsub.f32 %v83, %v94
  %s96 = sadd.s32 0, 0
  %s97 = smul.u32 %s96, 4
  %v98 = vlaneseq
  %v99 = vshrl.u32 %v98, 7
  %v100 = vstv %s97
  %v101 = vadd.s32 %v100, %v99
  %v102 = vld [vmem:[%s2] sm:$0xf]
  %vm103 = vcmp.lt.s32.totalorder %v101, 4
  %v104 = vmul.f32 %v95, 0.125
  %v105 = vsel %vm103, %v104, 0.0
  %v106 = vadd.f32 %v102, %v105
  %vm107 = vcmask 3072
  %108 = vst.msk [vmem:[%s2] sm:$0xf] %vm107, %v106
  // Predicated region
  $region14: #{tpu_custom_call.1} parent=0 // pred_check
    _
  $region15: #{tpu_custom_call.1} parent=0 // pred_check_branch
    %110 = sbr.rel (0) target = $region17
  $region16: #{tpu_custom_call.1} parent=0 // pred_region
    _
  $region17: #{tpu_custom_call.1} parent=0 // pred_fallthru
    _
  // Predicated region
  $region18: #{tpu_custom_call.1} parent=0 // pred_check
    _
  $region19: #{tpu_custom_call.1} parent=0 // pred_check_branch
    %112 = sbr.rel (0) target = $region21
  $region20: #{tpu_custom_call.1} parent=0 // pred_region
    _
  $region21: #{tpu_custom_call.1} parent=0 // pred_fallthru
    _

</llo_original>
